<compile_context>
chip_gen: v7x
topology: tpu7x:2x2x1
jax: 0.10.0
libtpu: 0.0.40
codegen_flags: <defaults>
</compile_context>

<pallas_src>
import jax
import jax.numpy as jnp
from jax.experimental import pallas as pl
from jax.experimental.pallas import tpu as pltpu


def _vmem_capacity_bytes() -> int:
    """Physical VMEM per TensorCore; conservative fallback if query fails."""
    try:
        cap = int(pltpu.get_tpu_info().vmem_capacity_bytes)
        if cap > 0:
            return cap
    except Exception:
        pass
    return 64 * 1024 * 1024  # v7x per-TC (smallest of v5e/v6e/v7x)


def _pick_hw_tile(hw: int, bytes_per_spatial_elem: int, block_budget: int) -> int:
    """Largest lane-aligned (multiple of 128) spatial tile whose double-buffered
    input blocks fit in `block_budget`; the full spatial extent if it fits."""
    t = (block_budget // max(bytes_per_spatial_elem, 1)) // 128 * 128
    t = max(t, 128)          # floor: one lane-group; vmem_limit is generous
    if t >= hw:
        return hw            # single full-extent spatial block (always legal)
    return t


def _make_statm_kernel(cx: int, cy: int, hw: int, t: int, inv_m: float, ragged: bool):
    inv_cx = 1.0 / float(cx)
    inv_cy = 1.0 / float(cy)

    def kernel(x_ref, y_ref, o_ref, acc_ref):
        # x_ref: (1, Cx, t)  y_ref: (1, Cy, t)
        # o_ref: (1, 1, 1) partial sum for this batch element
        # acc_ref: (1, t) f32 lane-dense running sum of d*d across spatial tiles
        j = pl.program_id(1)

        @pl.when(j == 0)
        def _init():
            acc_ref[...] = jnp.zeros_like(acc_ref)

        # Channel sums accumulated in f32 directly from the refs (no
        # materialized up-cast copy of the (C, t) tile).
        sx = jnp.sum(x_ref[...], axis=1, dtype=jnp.float32)   # (1, t)
        sy = jnp.sum(y_ref[...], axis=1, dtype=jnp.float32)   # (1, t)
        d = sx * inv_cx - sy * inv_cy                          # (1, t)

        if ragged:
            # Last spatial tile extends past H*W: zero the out-of-range lanes.
            lane = jax.lax.broadcasted_iota(jnp.int32, d.shape, dimension=1)
            rem = hw - j * t
            d = jnp.where(lane < rem, d, 0.0)

        # Elementwise (VPU) accumulate; the cross-lane reduce happens once, at
        # the final spatial step.
        acc_ref[...] += d * d

        @pl.when(j == pl.num_programs(1) - 1)
        def _finalize():
            o_ref[...] = (jnp.sum(acc_ref[...]) * inv_m).reshape(1, 1, 1)

    return kernel


def statm_loss_forward(x, y, eps=2, tile_override=None):
    """x: (N, Cx, H, W); y: (N, Cy, H, W).  Returns scalar f32 loss.

    `eps` is unused by the PyTorch forward; kept for signature parity.
    `tile_override` forces a spatial tile size (testing / tuning hook).
    """
    del eps
    n, cx, h, w = x.shape
    ny, cy, hy, wy = y.shape
    assert (n, h, w) == (ny, hy, wy), "batch/spatial dims of x and y must match"

    hw = h * w
    # Contiguous views (no data movement, no transposes): NCHW -> (N, C, H*W),
    # channels on sublanes, spatial on lanes.
    x3 = x.reshape(n, cx, hw)
    y3 = y.reshape(n, cy, hw)

    # Generation-aware VMEM budgets.
    vmem_cap = _vmem_capacity_bytes()
    vmem_limit = min(vmem_cap * 3 // 4, 96 * 1024 * 1024)     # ~48 MiB v7x, 96 MiB v5e/v6e
    block_budget = min(16 * 1024 * 1024, vmem_cap // 4)       # double-buffered input blocks

    # Bytes of input blocks per spatial element, including double buffering.
    bytes_per_elem = 2 * (cx * x.dtype.itemsize + cy * y.dtype.itemsize)
    if tile_override is not None:
        t = min(int(tile_override), hw)
    else:
        t = _pick_hw_tile(hw, bytes_per_elem, block_budget)

    n_tiles = pl.cdiv(hw, t)
    ragged = (hw % t) != 0
    inv_m = 1.0 / float(n * hw)

    # Per-batch-element partial sums so the batch axis can be sharded across
    # TensorCores on v7x ("parallel"); spatial tiles are the sequential
    # reduction axis ("arbitrary").
    partials = pl.pallas_call(
        _make_statm_kernel(cx, cy, hw, t, inv_m, ragged),
        out_shape=jax.ShapeDtypeStruct((n, 1, 1), jnp.float32),
        grid=(n, n_tiles),
        in_specs=[
            pl.BlockSpec((1, cx, t), lambda i, j: (i, 0, j)),
            pl.BlockSpec((1, cy, t), lambda i, j: (i, 0, j)),
        ],
        out_specs=pl.BlockSpec((1, 1, 1), lambda i, j: (i, 0, 0)),
        scratch_shapes=[pltpu.VMEM((1, t), jnp.float32)],
        compiler_params=pltpu.CompilerParams(
            dimension_semantics=("parallel", "arbitrary"),
            vmem_limit_bytes=int(vmem_limit),
        ),
    )(x3, y3)

    # Tiny cross-batch reduction of the pre-scaled partials (already / (N*H*W)).
    return jnp.sum(partials)


def _reference_statm_loss(x, y):
    """Pure-JAX reference matching the PyTorch module."""
    x_mean = jnp.mean(x.astype(jnp.float32), axis=1)
    y_mean = jnp.mean(y.astype(jnp.float32), axis=1)
    return jnp.mean((x_mean - y_mean) ** 2)


if __name__ == "__main__":
    key = jax.random.PRNGKey(0)
    kx, ky = jax.random.split(key)

    # Small shapes consistent with distillation: student/teacher feature maps
    # share batch + spatial dims; channel counts may differ (channel axis is
    # reduced before comparison).
    N, CX, CY, H, W = 2, 4, 8, 16, 16
    x = jax.random.normal(kx, (N, CX, H, W), dtype=jnp.float32)
    y = jax.random.normal(ky, (N, CY, H, W), dtype=jnp.float32)

    loss = jax.block_until_ready(statm_loss_forward(x, y))
    ref = _reference_statm_loss(x, y)
    assert loss.shape == ()
    assert jnp.allclose(loss, ref, atol=1e-5, rtol=1e-5), (float(loss), float(ref))

    # Exercise the ragged masked-tile path (H*W not a multiple of 128) with a
    # forced small tile so multiple spatial steps + lane masking are covered.
    H2, W2 = 13, 13
    x2 = jax.random.normal(kx, (N, CX, H2, W2), dtype=jnp.float32)
    y2 = jax.random.normal(ky, (N, CY, H2, W2), dtype=jnp.float32)
    loss2 = jax.block_until_ready(statm_loss_forward(x2, y2, tile_override=128))
    ref2 = _reference_statm_loss(x2, y2)
    assert jnp.allclose(loss2, ref2, atol=1e-5, rtol=1e-5), (float(loss2), float(ref2))

    print("KERNEL_OK")
</pallas_src>

<mosaic_0001>
module attributes {stable_mosaic.version = 11 : i64} {
  func.func @kernel(%arg0: i32, %arg1: i32, %arg2: memref<1x4x256xf32, #tpu.memory_space<vmem>>, %arg3: memref<1x8x256xf32, #tpu.memory_space<vmem>>, %arg4: memref<1x1x1xf32, #tpu.memory_space<vmem>>, %arg5: memref<1x256xf32, #tpu.memory_space<vmem>>) attributes {dimension_semantics = [#tpu.dimension_semantics<parallel>, #tpu.dimension_semantics<arbitrary>], iteration_bounds = array<i64: 2, 1>, scalar_prefetch = 0 : i64, scratch_operands = 1 : i64, tpu.core_type = #tpu.core_type<tc>, window_params = [{transform_indices = @transform_0, window_bounds = array<i64: 1, 4, 256>}, {transform_indices = @transform_1, window_bounds = array<i64: 1, 8, 256>}, {transform_indices = @transform_2, window_bounds = array<i64: 1, 1, 1>}]} {
    %c0_i32 = arith.constant 0 : i32
    %0 = arith.cmpi eq, %arg1, %c0_i32 : i32
    %1 = arith.extui %0 : i1 to i32
    %c0_i32_0 = arith.constant 0 : i32
    %2 = arith.cmpi ne, %1, %c0_i32_0 : i32
    scf.if %2 {
      %cst_15 = arith.constant 0.000000e+00 : f32
      %19 = vector.broadcast %cst_15 : f32 to vector<1x256xf32>
      %c0_16 = arith.constant 0 : index
      %c0_17 = arith.constant 0 : index
      %20 = vector.load %arg5[%c0_16, %c0_17] : memref<1x256xf32, #tpu.memory_space<vmem>>, vector<1x256xf32>
      tpu.vector_store %arg5[%c0_16, %c0_17], %19 {strides = array<i32>} : memref<1x256xf32, #tpu.memory_space<vmem>>, vector<1x256xf32>,
    } else {
    }
    %c0 = arith.constant 0 : index
    %c0_1 = arith.constant 0 : index
    %c0_2 = arith.constant 0 : index
    %3 = vector.load %arg2[%c0, %c0_1, %c0_2] : memref<1x4x256xf32, #tpu.memory_space<vmem>>, vector<1x4x256xf32>
    %cst = arith.constant dense<0.000000e+00> : vector<1x256xf32>
    %4 = vector.multi_reduction <add>, %3, %cst [1] : vector<1x4x256xf32> to vector<1x256xf32>
    %c0_3 = arith.constant 0 : index
    %c0_4 = arith.constant 0 : index
    %c0_5 = arith.constant 0 : index
    %5 = vector.load %arg3[%c0_3, %c0_4, %c0_5] : memref<1x8x256xf32, #tpu.memory_space<vmem>>, vector<1x8x256xf32>
    %cst_6 = arith.constant dense<0.000000e+00> : vector<1x256xf32>
    %6 = vector.multi_reduction <add>, %5, %cst_6 [1] : vector<1x8x256xf32> to vector<1x256xf32>
    %cst_7 = arith.constant 2.500000e-01 : f32
    %7 = vector.broadcast %cst_7 : f32 to vector<1x256xf32>
    %8 = arith.mulf %4, %7 : vector<1x256xf32>
    %cst_8 = arith.constant 1.250000e-01 : f32
    %9 = vector.broadcast %cst_8 : f32 to vector<1x256xf32>
    %10 = arith.mulf %6, %9 : vector<1x256xf32>
    %11 = arith.subf %8, %10 : vector<1x256xf32>
    %c0_9 = arith.constant 0 : index
    %c0_10 = arith.constant 0 : index
    %12 = vector.load %arg5[%c0_9, %c0_10] : memref<1x256xf32, #tpu.memory_space<vmem>>, vector<1x256xf32>
    %13 = arith.mulf %11, %11 : vector<1x256xf32>
    %14 = arith.addf %12, %13 : vector<1x256xf32>
    %c0_11 = arith.constant 0 : index
    %c0_12 = arith.constant 0 : index
    %15 = vector.load %arg5[%c0_11, %c0_12] : memref<1x256xf32, #tpu.memory_space<vmem>>, vector<1x256xf32>
    tpu.vector_store %arg5[%c0_11, %c0_12], %14 {strides = array<i32>} : memref<1x256xf32, #tpu.memory_space<vmem>>, vector<1x256xf32>,
    %c0_i32_13 = arith.constant 0 : i32
    %16 = arith.cmpi eq, %arg1, %c0_i32_13 : i32
    %17 = arith.extui %16 : i1 to i32
    %c0_i32_14 = arith.constant 0 : i32
    %18 = arith.cmpi ne, %17, %c0_i32_14 : i32
    scf.if %18 {
      %c0_15 = arith.constant 0 : index
      %c0_16 = arith.constant 0 : index
      %19 = vector.load %arg5[%c0_15, %c0_16] : memref<1x256xf32, #tpu.memory_space<vmem>>, vector<1x256xf32>
      %20 = vector.shape_cast %19 : vector<1x256xf32> to vector<1x1x256xf32>
      %cst_17 = arith.constant dense<0.000000e+00> : vector<1xf32>
      %21 = vector.multi_reduction <add>, %20, %cst_17 [1, 2] : vector<1x1x256xf32> to vector<1xf32>
      %22 = vector.shape_cast %21 : vector<1xf32> to vector<1x1x1xf32>
      %23 = vector.extract %22[0, 0, 0] : f32 from vector<1x1x1xf32>
      %cst_18 = arith.constant 0.001953125 : f32
      %24 = arith.mulf %23, %cst_18 : f32
      %25 = vector.broadcast %24 : f32 to vector<1x1x1xf32>
      %c0_19 = arith.constant 0 : index
      %c0_20 = arith.constant 0 : index
      %c0_21 = arith.constant 0 : index
      %26 = vector.load %arg4[%c0_19, %c0_20, %c0_21] : memref<1x1x1xf32, #tpu.memory_space<vmem>>, vector<1x1x1xf32>
      tpu.vector_store %arg4[%c0_19, %c0_20, %c0_21], %25 {strides = array<i32>} : memref<1x1x1xf32, #tpu.memory_space<vmem>>, vector<1x1x1xf32>,
    } else {
    }
    return
  }
  func.func @transform_0(%arg0: i32, %arg1: i32) -> (i32, i32, i32) {
    %c0_i32 = arith.constant 0 : i32
    %c0_i32_0 = arith.constant 0 : i32
    return %arg0, %c0_i32, %arg1 : i32, i32, i32
  }
  func.func @transform_1(%arg0: i32, %arg1: i32) -> (i32, i32, i32) {
    %c0_i32 = arith.constant 0 : i32
    %c0_i32_0 = arith.constant 0 : i32
    return %arg0, %c0_i32, %arg1 : i32, i32, i32
  }
  func.func @transform_2(%arg0: i32, %arg1: i32) -> (i32, i32, i32) {
    %c0_i32 = arith.constant 0 : i32
    %c0_i32_0 = arith.constant 0 : i32
    %c0_i32_1 = arith.constant 0 : i32
    return %arg0, %c0_i32, %c0_i32_0 : i32, i32, i32
  }
}

</mosaic_0001>

<llo_original>
// kernel: tpu_custom_call.1
$region0: #{tpu_custom_call.1}
  #allocation0 [shape = 'u32[]', space=smem, size = 0x4, offset = 0x4, fixed_abs, tag = 'smem constant byte address 0x4 - core index']
  #allocation1 [shape = 'u32[144,128]{1,0:T(1,128)}', space=vmem, size = 0x12000, scoped, tag = 'internal scratch']
  #allocation2 [shape = 'f32[1,256]{1,0:T(1,128)}', space=vmem, size = 0x400, scoped, tag = 'scratch operand']
  %s0 = inlined_call_operand.hbm [shape: f32[2,4,256], index: 0, kind: input, shape index: {}]
  %s1 = inlined_call_operand.hbm [shape: f32[2,8,256], index: 1, kind: input, shape index: {}]
  %s2 = inlined_call_operand.vmem [shape: f32[2,1,1], index: 2, kind: output, shape index: {}]
  %s3 = sld [smem:[#allocation0]]
  $region57: #{tpu_custom_call.1} parent=0
    _
  %s5 = ssub.s32 1, %s3
  %s6 = scalar_select 0, %s5, %s3
  $region1: #{tpu_custom_call.1} parent=0
    #allocation3 [shape = 'u8[8192]{0}', space=vmem, size = 0x2000, scoped, tag = 'input window, operand 0']
    #allocation4 [shape = 's32[2]{0}', space=sflag, size = 0x8, scoped, tag = 'scoped memory for tpu_custom_call.1']
    #allocation5 [shape = 'u8[16384]{0}', space=vmem, size = 0x4000, scoped, tag = 'input window, operand 1']
    #allocation6 [shape = 's32[2]{0}', space=sflag, size = 0x8, scoped, tag = 'scoped memory for tpu_custom_call.1']
    %7 = vsyncpa [#allocation4], 0
    %s8 = scalar_lea.sflag [#allocation4], 1
    %9 = vsyncpa %s8, 0
    %10 = vsyncpa [#allocation6], 0
    %s11 = scalar_lea.sflag [#allocation6], 1
    %12 = vsyncpa %s11, 0
    loop: start=0, step=1, limit=4
    $region2: #{tpu_custom_call.1} parent=1 // loop_pre_header
      _
    $region3: #{tpu_custom_call.1} parent=1 // loop_header
      %s14 = sphi 0, %s18
      %p15 = scmp.ge.s32.totalorder %s14, 4
      %s21 = sphi 0, %s33
      %s22 = sphi 0, %s29
      %s23 = sphi 0, %s21
      %s24 = sphi 0, %s22
      %s25 = sphi 0, %s23
      %s26 = sphi 0, %s24
      %s38 = sphi 0, %s40
      %s41 = sphi 0, %s38
      %s42 = sphi 0, %s41
      %s58 = sphi 0, %s42
      %s66 = sphi 0, %s68
      %s69 = sphi 0, %s66
      %s70 = sphi 0, %s69
      %s86 = sphi 0, %s70
      %s92 = sphi 0, %s94
      %s95 = sphi 0, %s92
      %s96 = sphi 0, %s95
      %s112 = sphi 0, %s96
    $region4: #{tpu_custom_call.1} parent=1 // loop_header_branch
      %17 = sbr.rel (%p15) target = $region8
    $region5: #{tpu_custom_call.1} parent=1 // loop_body
      %s19 = ssub.s32 %s14, 1
      %s20 = ssub.s32 %s14, 2
      %s27 = sadd.s32 1, %s22
      %p28 = scmp.ge.s32.totalorder %s27, 1
      %s29 = scalar_select %p28, 0, %s27
      %s30 = sadd.s32 1, %s21
      %s31 = scalar_select %p28, %s30, %s21
      %p32 = scmp.ge.s32.totalorder %s31, 2
      %s33 = scalar_select %p32, 0, %s31
      %s34 = ssub.s32 %s21, %s33
      %s35 = ssub.s32 %s22, %s29
      %s36 = sor.u32 %s34, %s35
      %p37 = scmp.eq.s32.totalorder %s36, 0
      %s39 = sadd.s32 %s38, 1
      %s40 = scalar_select %p37, %s38, %s39
      %p43 = pneg %p37
      %p44 = scmp.eq.s32.totalorder %s14, 1
      %p45 = por %p43, %p44
      %p46 = scmp.ne.s32.totalorder %s38, %s41
      %p47 = scmp.eq.s32.totalorder %s14, 0
      %p48 = por %p46, %p47
      %p49 = scmp.ne.s32.totalorder %s38, %s41
      %p50 = scmp.eq.s32.totalorder %s19, 1
      %p51 = por %p49, %p50
      %p52 = scmp.ne.s32.totalorder %s41, %s42
      %p53 = scmp.eq.s32.totalorder %s19, 0
      %p54 = por %p52, %p53
      %p55 = scmp.ne.s32.totalorder %s41, %s42
      %p56 = scmp.eq.s32.totalorder %s20, 1
      %p57 = por %p55, %p56
      %p59 = scmp.ne.s32.totalorder %s42, %s58
      %p60 = scmp.eq.s32.totalorder %s20, 0
      %p61 = por %p59, %p60
      %s62 = ssub.s32 %s21, %s33
      %s63 = ssub.s32 %s22, %s29
      %s64 = sor.u32 %s62, %s63
      %p65 = scmp.eq.s32.totalorder %s64, 0
      %s67 = sadd.s32 %s66, 1
      %s68 = scalar_select %p65, %s66, %s67
      %p71 = pneg %p65
      %p72 = scmp.eq.s32.totalorder %s14, 1
      %p73 = por %p71, %p72
      %p74 = scmp.ne.s32.totalorder %s66, %s69
      %p75 = scmp.eq.s32.totalorder %s14, 0
      %p76 = por %p74, %p75
      %p77 = scmp.ne.s32.totalorder %s66, %s69
      %p78 = scmp.eq.s32.totalorder %s19, 1
      %p79 = por %p77, %p78
      %p80 = scmp.ne.s32.totalorder %s69, %s70
      %p81 = scmp.eq.s32.totalorder %s19, 0
      %p82 = por %p80, %p81
      %p83 = scmp.ne.s32.totalorder %s69, %s70
      %p84 = scmp.eq.s32.totalorder %s20, 1
      %p85 = por %p83, %p84
      %p87 = scmp.ne.s32.totalorder %s70, %s86
      %p88 = scmp.eq.s32.totalorder %s20, 0
      %p89 = por %p87, %p88
      %s90 = ssub.s32 %s21, %s33
      %p91 = scmp.eq.s32.totalorder %s90, 0
      %s93 = sadd.s32 %s92, 1
      %s94 = scalar_select %p91, %s92, %s93
      %p97 = pneg %p91
      %p98 = scmp.eq.s32.totalorder %s14, 1
      %p99 = por %p97, %p98
      %p100 = scmp.ne.s32.totalorder %s92, %s95
      %p101 = scmp.eq.s32.totalorder %s14, 0
      %p102 = por %p100, %p101
      %p103 = scmp.ne.s32.totalorder %s92, %s95
      %p104 = scmp.eq.s32.totalorder %s19, 1
      %p105 = por %p103, %p104
      %p106 = scmp.ne.s32.totalorder %s95, %s96
      %p107 = scmp.eq.s32.totalorder %s19, 0
      %p108 = por %p106, %p107
      %p109 = scmp.ne.s32.totalorder %s95, %s96
      %p110 = scmp.eq.s32.totalorder %s20, 1
      %p111 = por %p109, %p110
      %p113 = scmp.ne.s32.totalorder %s96, %s112
      %p114 = scmp.eq.s32.totalorder %s20, 0
      %p115 = por %p113, %p114
      %p116 = scmp.le.s32.totalorder 1, %s14
      %p117 = scmp.lt.s32.totalorder %s14, 3
      %p118 = pnand %p116, %p117
      %p119 = pneg %p118
      // Predicated region
      $region9: #{tpu_custom_call.1} parent=5 // pred_check
        _
      $region10: #{tpu_custom_call.1} parent=5 // pred_check_branch
        %121 = sbr.rel (%p118) target = $region12
      $region11: #{tpu_custom_call.1} parent=5 // pred_region
        %s122 = ssub.s32 %s14, 1
      $region12: #{tpu_custom_call.1} parent=5 // pred_fallthru
        _
      %p123 = scmp.lt.s32.totalorder %s14, 2
      // Predicated region
      $region13: #{tpu_custom_call.1} parent=5 // pred_check
        %p124 = pneg %p123
      $region14: #{tpu_custom_call.1} parent=5 // pred_check_branch
        %126 = sbr.rel (%p124) target = $region16
      $region15: #{tpu_custom_call.1} parent=5 // pred_region
        // Predicated region
        $region17: #{tpu_custom_call.1} parent=15 // pred_check
          %p127 = pneg %p48
        $region18: #{tpu_custom_call.1} parent=15 // pred_check_branch
          %129 = sbr.rel (%p127) target = $region20
        $region19: #{tpu_custom_call.1} parent=15 // pred_region
          %s130 = sand.u32 %s38, 1
          %s131 = scalar_lea.sflag [#allocation4], %s130
          %s132 = sand.u32 %s38, 1
          %s133 = smul.addr %s132, 8
          %s134 = scalar_lea.vmem [#allocation3], %s133
          %s135 = smul.u32 2, %s22
          %s137 = ssub.s32 128, 128
          %138 = vsyncadd %s131, %s137
          %s139 = smul.addr %s21, 2
          %s140 = sadd.s32 %s135, %s139
          %s141 = smul.addr %s140, 64
          %s142 = scalar_lea.hbm %s0, %s141
          %s144 = sshll.u32 %s134, 4
          %s145 = int_to_ptr.vmem [resolvable:$true] %s144
          %147 = dma.hbm_to_vmem [thread:$0]  %s142, 128, %s145, %s131
        $region20: #{tpu_custom_call.1} parent=15 // pred_fallthru
          _
        // Predicated region
        $region21: #{tpu_custom_call.1} parent=15 // pred_check
          %p148 = pneg %p76
        $region22: #{tpu_custom_call.1} parent=15 // pred_check_branch
          %150 = sbr.rel (%p148) target = $region24
        $region23: #{tpu_custom_call.1} parent=15 // pred_region
          %s151 = sand.u32 %s66, 1
          %s152 = scalar_lea.sflag [#allocation6], %s151
          %s153 = sand.u32 %s66, 1
          %s154 = smul.addr %s153, 16
          %s155 = scalar_lea.vmem [#allocation5], %s154
          %s156 = smul.u32 2, %s22
          %s158 = ssub.s32 256, 256
          %159 = vsyncadd %s152, %s158
          %s160 = smul.addr %s21, 2
          %s161 = sadd.s32 %s156, %s160
          %s162 = smul.addr %s161, 128
          %s163 = scalar_lea.hbm %s1, %s162
          %s165 = sshll.u32 %s155, 4
          %s166 = int_to_ptr.vmem [resolvable:$true] %s165
          %168 = dma.hbm_to_vmem [thread:$0]  %s163, 256, %s166, %s152
        $region24: #{tpu_custom_call.1} parent=15 // pred_fallthru
          _
      $region16: #{tpu_custom_call.1} parent=5 // pred_fallthru
        _
      %p169 = scmp.le.s32.totalorder 1, %s14
      %p170 = scmp.lt.s32.totalorder %s14, 3
      %p171 = pnand %p169, %p170
      %p172 = pneg %p171
      // Predicated region
      $region25: #{tpu_custom_call.1} parent=5 // pred_check
        _
      $region26: #{tpu_custom_call.1} parent=5 // pred_check_branch
        %174 = sbr.rel (%p171) target = $region28
      $region27: #{tpu_custom_call.1} parent=5 // pred_region
        %s175 = ssub.s32 %s14, 1
        %s176 = sand.u32 %s41, 1
        %s177 = scalar_lea.sflag [#allocation4], %s176
        %s178 = sand.u32 %s41, 1
        %s179 = smul.addr %s178, 8
        %s180 = scalar_lea.vmem [#allocation3], %s179
        // Predicated region
        $region29: #{tpu_custom_call.1} parent=27 // pred_check
          %p181 = pneg %p54
        $region30: #{tpu_custom_call.1} parent=27 // pred_check_branch
          %183 = sbr.rel (%p181) target = $region32
        $region31: #{tpu_custom_call.1} parent=27 // pred_region
          %184 = dma.done %s177, 128
        $region32: #{tpu_custom_call.1} parent=27 // pred_fallthru
          _
        %s185 = sand.u32 %s69, 1
        %s186 = scalar_lea.sflag [#allocation6], %s185
        %s187 = sand.u32 %s69, 1
        %s188 = smul.addr %s187, 16
        %s189 = scalar_lea.vmem [#allocation5], %s188
        // Predicated region
        $region33: #{tpu_custom_call.1} parent=27 // pred_check
          %p190 = pneg %p82
        $region34: #{tpu_custom_call.1} parent=27 // pred_check_branch
          %192 = sbr.rel (%p190) target = $region36
        $region35: #{tpu_custom_call.1} parent=27 // pred_region
          %193 = dma.done %s186, 256
        $region36: #{tpu_custom_call.1} parent=27 // pred_fallthru
          _
        %s194 = sand.u32 %s41, 1
        %s195 = scalar_lea.sflag [#allocation4], %s194
        %s196 = sand.u32 %s41, 1
        %s197 = smul.addr %s196, 8
        %s198 = scalar_lea.vmem [#allocation3], %s197
        %p199 = pneg %p54
        %p200 = pneg %p51
        %s201 = sand.u32 %s69, 1
        %s202 = scalar_lea.sflag [#allocation6], %s201
        %s203 = sand.u32 %s69, 1
        %s204 = smul.addr %s203, 16
        %s205 = scalar_lea.vmem [#allocation5], %s204
        %p206 = pneg %p82
        %p207 = pneg %p79
        %p208 = pneg %p108
        %p209 = pneg %p105
        %p210 = scmp.lt.s32.totalorder %s23, 1
        %s211 = scalar_select %p210, %s23, 1
        %s212 = scalar_lea.vmem %s2, %s211
        %s213 = smul.u32 2, %s24
        %s214 = smul.u32 2, %s24
        %p215 = scmp.lt.s32.totalorder %s23, 1
        %s216 = scalar_select %p215, %s23, 1
        %s217 = scalar_lea.vmem %s2, %s216
        %p218 = scmp.eq.s32.totalorder %s24, 0
        // Predicated region
        $region37: #{tpu_custom_call.1} parent=27 // pred_check
          %p219 = pneg %p218
        $region38: #{tpu_custom_call.1} parent=27 // pred_check_branch
          %221 = sbr.rel (%p219) target = $region40
        $region39: #{tpu_custom_call.1} parent=27 // pred_region
          %v222 = vlaneseq
          %vm223 = vcmp.ge.s32.totalorder %v222, 0
          %vm224 = vcmp.lt.s32.totalorder %v222, 256
          %vm225 = vmand %vm223, %vm224
          %226 = vst.msk [vmem:[#allocation2] sm:$0x3] %vm225, 0.0
        $region40: #{tpu_custom_call.1} parent=27 // pred_fallthru
          _
        %v227 = vld [vmem:[%s180] sm:$0xff]
        %v229 = vcombine.high %v227, %v227
        %vm231 = vcmask 1043456
        %v232 = vsel %vm231, %v227, 0.0
        %v233 = vrot.slane %v232, 4
        %v234 = vadd.f32 %v232, %v233
        %v235 = vrot.slane %v234, 2
        %v236 = vadd.f32 %v234, %v235
        %v237 = vrot.slane %v236, 1
        %v238 = vadd.f32 %v236, %v237
        %v239 = vsel %vm231, %v229, 0.0
        %v240 = vrot.slane %v239, 4
        %v241 = vadd.f32 %v239, %v240
        %v242 = vrot.slane %v241, 2
        %v243 = vadd.f32 %v241, %v242
        %v244 = vrot.slane %v243, 1
        %v245 = vadd.f32 %v243, %v244
        %v246 = vld [vmem:[%s189] sm:$0xff]
        %v247 = vld [vmem:[%s189 + $0x8] sm:$0xff]
        %v248 = vrot.slane %v246, 4
        %v249 = vadd.f32 %v246, %v248
        %v250 = vrot.slane %v249, 2
        %v251 = vadd.f32 %v249, %v250
        %v252 = vrot.slane %v251, 1
        %v253 = vadd.f32 %v251, %v252
        %v254 = vrot.slane %v247, 4
        %v255 = vadd.f32 %v247, %v254
        %v256 = vrot.slane %v255, 2
        %v257 = vadd.f32 %v255, %v256
        %v258 = vrot.slane %v257, 1
        %v259 = vadd.f32 %v257, %v258
        %v260 = vmul.f32 %v238, 0.25
        %v261 = vmul.f32 %v245, 0.25
        %v262 = vmul.f32 %v253, 0.125
        %v263 = vmul.f32 %v259, 0.125
        %v264 = vsub.f32 %v260, %v262
        %v265 = vsub.f32 %v261, %v263
        %v266 = vld [vmem:[#allocation2] sm:$0x3]
        %v267 = vmul.f32 %v264, %v264
        %v268 = vmul.f32 %v265, %v265
        %v271 = vcombine.low %v267, %v268
        %v273 = vunpack.c.l.s4 1966171168
        %v274 = vunpack.c.0.s8 %v273
        %v275 = vlaneseq
        %v276 = vshrl.u32 %v275, 7
        %v277 = vsub.s32 %v274, %v276
        %v278 = vrot.slane %v271, %v277
        %v280 = vunpack.c.l.s4 1966171168
        %v281 = vunpack.c.0.s8 %v280
        %v282 = vlaneseq
        %v283 = vshrl.u32 %v282, 7
        %v284 = vsub.s32 %v281, %v283
        %v285 = vrot.slane %v278, %v284
        %v287 = vadd.f32 %v266, %v285
        %v288 = vlaneseq
        %vm289 = vcmp.ge.s32.totalorder %v288, 0
        %vm290 = vcmp.lt.s32.totalorder %v288, 256
        %vm291 = vmand %vm289, %vm290
        %292 = vst.msk [vmem:[#allocation2] sm:$0x3] %vm291, %v287
        // Predicated region
        $region41: #{tpu_custom_call.1} parent=27 // pred_check
          %p293 = pneg %p218
        $region42: #{tpu_custom_call.1} parent=27 // pred_check_branch
          %295 = sbr.rel (%p293) target = $region44
        $region43: #{tpu_custom_call.1} parent=27 // pred_region
          %v296 = vld [vmem:[#allocation2] sm:$0x3]
          %v298 = vlaneseq
          %v299 = vshrl.u32 %v298, 7
          %v300 = vsub.s32 0, %v299
          %v301 = vrot.slane %v296, %v300
          %v302 = vlaneseq
          %v303 = vshrl.u32 %v302, 7
          %v304 = vsub.s32 1, %v303
          %v305 = vrot.slane %v296, %v304
          %vm308 = vcmask 1040384
          %v309 = vsel %vm308, %v301, 0.0
          %v310 = vsel %vm308, %v305, 0.0
          %v311 = vadd.f32 %v309, %v310
          %312 = vadd.xlane.f32.xlu0 %v311
          %v313 = vpop.xlane.xlu0 %312
          %v314 = vrot.slane %v313, 4
          %v315 = vadd.f32 %v313, %v314
          %v316 = vrot.slane %v315, 2
          %v317 = vadd.f32 %v315, %v316
          %v318 = vrot.slane %v317, 1
          %v319 = vadd.f32 %v317, %v318
          %s320 = vtos %v319
          %s321 = smul.f32 %s320, 0.001953125
          %v322 = vstv %s321
          %vm323 = vcmask 0
          %324 = vst.msk [vmem:[%s217] sm:$0x1] %vm323, %v322
        $region44: #{tpu_custom_call.1} parent=27 // pred_fallthru
          _
        %p325 = scmp.lt.s32.totalorder %s23, 1
        %s326 = scalar_select %p325, %s23, 1
        %s327 = scalar_lea.vmem %s2, %s326
        // Predicated region
        $region45: #{tpu_custom_call.1} parent=27 // pred_check
          %p328 = pneg %p105
        $region46: #{tpu_custom_call.1} parent=27 // pred_check_branch
          %330 = sbr.rel (%p328) target = $region48
        $region47: #{tpu_custom_call.1} parent=27 // pred_region
          _
        $region48: #{tpu_custom_call.1} parent=27 // pred_fallthru
          _
      $region28: #{tpu_custom_call.1} parent=5 // pred_fallthru
        _
      %p331 = scmp.le.s32.totalorder 2, %s14
      // Predicated region
      $region49: #{tpu_custom_call.1} parent=5 // pred_check
        %p332 = pneg %p331
      $region50: #{tpu_custom_call.1} parent=5 // pred_check_branch
        %334 = sbr.rel (%p332) target = $region52
      $region51: #{tpu_custom_call.1} parent=5 // pred_region
        %s335 = ssub.s32 %s14, 2
        // Predicated region
        $region53: #{tpu_custom_call.1} parent=51 // pred_check
          %p336 = pneg %p111
        $region54: #{tpu_custom_call.1} parent=51 // pred_check_branch
          %338 = sbr.rel (%p336) target = $region56
        $region55: #{tpu_custom_call.1} parent=51 // pred_region
          %p339 = scmp.lt.s32.totalorder %s25, 1
          %s340 = scalar_select %p339, %s25, 1
          %s341 = scalar_lea.vmem %s2, %s340
        $region56: #{tpu_custom_call.1} parent=51 // pred_fallthru
          _
      $region52: #{tpu_custom_call.1} parent=5 // pred_fallthru
        _
    $region6: #{tpu_custom_call.1} parent=1 // loop_footer
      %s18 = sadd.s32 1, %s14
    $region7: #{tpu_custom_call.1} parent=1 // loop_footer_branch
      %13 = sbr.rel target = $region3
    $region8: #{tpu_custom_call.1} parent=1 // loop_exit
      _
    %342 = vsyncpa [#allocation4], 1
    %s343 = scalar_lea.sflag [#allocation4], 1
    %344 = vsyncpa %s343, 1
    %345 = vsyncpa [#allocation6], 1
    %s346 = scalar_lea.sflag [#allocation6], 1
    %347 = vsyncpa %s346, 1

</llo_original>
